<compile_context>
chip_gen: v7x
topology: tpu7x:2x2x1
jax: 0.10.0
libtpu: 0.0.40
codegen_flags: <defaults>
</compile_context>

<pallas_src>
import functools

import jax
import jax.numpy as jnp
import numpy as np
from jax import lax
from jax.experimental import pallas as pl
from jax.experimental.pallas import tpu as pltpu


def _reinforcer_kernel(g_ref, h_ref, w_ref, b_ref, m_ref, o_ref,
                       xpad_ref, patch_ref, *, hidden_dim, width, halo):
    # g_ref:     (TB, g_dim, HW)        channels-major, spatial flattened
    # h_ref:     (TB, hidden, HW)
    # w_ref:     (3*hidden, 9*c_in)     im2col weight matrix
    # b_ref:     (3*hidden, 1)
    # m_ref:     (2, HW)   [0]: col != 0 (dx=-1), [1]: col != W-1 (dx=+1)
    # o_ref:     (TB, hidden, HW)
    # xpad_ref:  (c_in, HW + 2*halo)    zero-halo scratch for one image
    # patch_ref: (9*c_in, HW)           im2col patches for one image
    TB, g_dim, HW = g_ref.shape
    hid = hidden_dim
    c_in = g_dim + hid

    # Keep the halo columns zero: the flat shift dy*W + dx lands in the halo
    # whenever y+dy is out of range, which implements the pad=1 rows.
    # Must be re-zeroed every grid step (each TensorCore has its own scratch
    # under dimension_semantics=("parallel",)).
    zhalo = jnp.zeros((c_in, halo), xpad_ref.dtype)
    xpad_ref[:, 0:halo] = zhalo
    xpad_ref[:, halo + HW:halo + HW + halo] = zhalo

    # Hoisted broadcasts: JAX does not CSE broadcast_in_dim, so build these
    # once per grid step instead of per tap / per image.
    mask_l = jnp.broadcast_to(m_ref[0:1, :], (c_in, HW))   # zero where x == 0
    mask_r = jnp.broadcast_to(m_ref[1:2, :], (c_in, HW))   # zero where x == W-1
    bias_b = jnp.broadcast_to(b_ref[...].astype(jnp.float32), (3 * hid, HW))
    w = w_ref[...]

    for tb in range(TB):
        # Direct stores into the padded-image scratch -- no concat
        # intermediate, and h is read from VMEM exactly once per image.
        h_tb = h_ref[tb]
        xpad_ref[0:g_dim, halo:halo + HW] = g_ref[tb]
        xpad_ref[g_dim:c_in, halo:halo + HW] = h_tb

        # Build the (tap, channel)-ordered im2col patch; rows match the
        # OIHW -> (c_out, 9*c_in) weight reshape done in the wrapper.
        for t in range(9):
            dy, dx = t // 3 - 1, t % 3 - 1
            start = halo + dy * width + dx
            sh = xpad_ref[:, start:start + HW]              # (c_in, HW)
            if dx == -1:
                sh = sh * mask_l
            elif dx == 1:
                sh = sh * mask_r
            if sh.dtype != patch_ref.dtype:
                sh = sh.astype(patch_ref.dtype)
            patch_ref[t * c_in:(t + 1) * c_in, :] = sh

        # Per-image fused MXU contraction + gating.  Live f32 set is bounded
        # to (3*hid, HW); the next image's patch build / matmul co-issues
        # with this image's EUP sigmoid/tanh (different VLIW slots).
        # TODO(synk): on v5e, A/B this im2col form against 9 accumulated
        # per-tap dots (eliminates patch_ref stores; v5e has 1 vst slot).
        acc = jnp.dot(w, patch_ref[...],
                      preferred_element_type=jnp.float32)   # (3*hid, HW)
        acc = acc + bias_b
        forget = jax.nn.sigmoid(acc[:hid, :])
        update = jax.nn.sigmoid(acc[hid:2 * hid, :])
        newval = jnp.tanh(acc[2 * hid:, :])
        h_f32 = h_tb.astype(jnp.float32)
        new_h = forget * h_f32 * (1.0 - update) + update * newval
        o_ref[tb] = new_h.astype(o_ref.dtype)


def _pick_block(bn, per_tb_bytes, fixed_bytes, budget, *, min_steps=4, max_tb=16):
    """Largest TB dividing BN that (a) leaves >= min_steps pipelined grid
    steps (>= 2 per TensorCore on v7x, so DMA overlaps compute) and (b) fits
    the VMEM budget (fixed scratch + double-buffered I/O blocks).  Any divisor
    of BN is allowed (no silent TB=1 collapse for awkward BN); TB=1 is the
    always-legal fallback."""
    best = 1
    for tb in range(1, min(bn, max_tb) + 1):
        if bn % tb:
            continue
        if bn // tb < min_steps and tb > 1:
            continue
        if fixed_bytes + 2 * tb * per_tb_bytes > budget:
            continue
        best = tb
    return best


def hidden_reinforcer(g, h, weight, bias, *, hidden_dim, matmul_dtype=None):
    """g: [B, N, g_dim, H, W], h: [B, N, hidden, H, W] (PyTorch layout).
    weight: [3*hidden, g_dim+hidden, 3, 3] (OIHW), bias: [3*hidden].
    Returns new_h: [B, N, hidden, H, W].

    matmul_dtype: optional (e.g. jnp.bfloat16) operand dtype for the im2col
    weight / patch (accumulation stays f32); default keeps the input dtype so
    the tight f32 tolerance holds."""
    B, N, g_dim, H, W = g.shape
    c_in = g_dim + hidden_dim
    c_out = 3 * hidden_dim
    BN = B * N
    HW = H * W
    in_dtype = np.dtype(g.dtype)
    mm_dtype = np.dtype(matmul_dtype) if matmul_dtype is not None else in_dtype

    # Free reshapes only -- no concat / transpose / pad materialized in HBM.
    # TODO(synk): if g/h/out ever run in bf16/int8, flatten I/O to 2-D
    # (BN*C, HW) blocks so the 16/32-row sublane packing stays tile-exact;
    # with f32 (8-row packing) this 3-D layout is already exact.
    g_flat = g.reshape(BN, g_dim, HW)
    h_flat = h.reshape(BN, hidden_dim, HW)

    # OIHW -> im2col matrix (c_out, 9*c_in): column = tap*c_in + channel,
    # tap = ky*3 + kx (matches the kernel's tap enumeration).
    wm = jnp.transpose(weight, (0, 2, 3, 1)).reshape(c_out, 9 * c_in).astype(mm_dtype)
    b_col = bias.reshape(c_out, 1).astype(jnp.float32)

    # Column-validity masks for the dx = -1 / +1 taps (y padding is handled by
    # the zero-filled halo scratch inside the kernel).
    col = np.arange(HW) % W
    masks = jnp.asarray(np.stack([(col != 0), (col != W - 1)]).astype(np.float32),
                        dtype=g.dtype)

    # Lane-aligned halo covering the largest flat shift (W + 1).
    halo = ((W + 1 + 127) // 128) * 128
    assert halo >= W + 1

    # Generation-aware VMEM budgeting: raise the scoped limit explicitly
    # (defaults are 16/32/32 MiB on v5e/v6e/v7x) and keep headroom below the
    # physical capacity (128/128/64 MiB).
    try:
        vmem_cap = int(getattr(pltpu.get_tpu_info(), "vmem_capacity_bytes",
                               64 << 20))
    except Exception:  # pragma: no cover - conservative fallback (v7x size)
        vmem_cap = 64 << 20
    vmem_limit = int(min(vmem_cap * 3 // 4, 100 << 20))
    vmem_limit = max(vmem_limit, 32 << 20)
    budget = vmem_limit - (4 << 20)

    itemsize = in_dtype.itemsize
    mm_itemsize = mm_dtype.itemsize
    fixed_bytes = (c_in * (HW + 2 * halo) * itemsize           # xpad scratch
                   + 9 * c_in * HW * mm_itemsize               # patch scratch
                   + 2 * (c_out * 9 * c_in * mm_itemsize       # weight (dbl buf)
                          + c_out * 4 + 2 * HW * itemsize))    # bias + masks
    per_tb_bytes = (g_dim + 2 * hidden_dim) * HW * itemsize    # g,h in + h out

    TB = _pick_block(BN, per_tb_bytes, fixed_bytes, budget)
    assert BN % TB == 0
    grid = (BN // TB,)

    kernel = functools.partial(_reinforcer_kernel, hidden_dim=hidden_dim,
                               width=W, halo=halo)

    cost = pl.CostEstimate(
        flops=2 * BN * HW * (9 * c_in) * c_out,
        transcendentals=3 * BN * hidden_dim * HW,
        bytes_accessed=itemsize * (g_flat.size + 2 * h_flat.size)
                       + c_out * 9 * c_in * mm_itemsize)

    out = pl.pallas_call(
        kernel,
        out_shape=jax.ShapeDtypeStruct((BN, hidden_dim, HW), h.dtype),
        grid_spec=pltpu.PrefetchScalarGridSpec(
            num_scalar_prefetch=0,
            grid=grid,
            in_specs=[
                pl.BlockSpec((TB, g_dim, HW), lambda i: (i, 0, 0)),
                pl.BlockSpec((TB, hidden_dim, HW), lambda i: (i, 0, 0)),
                pl.BlockSpec((c_out, 9 * c_in), lambda i: (0, 0)),
                pl.BlockSpec((c_out, 1), lambda i: (0, 0)),
                pl.BlockSpec((2, HW), lambda i: (0, 0)),
            ],
            out_specs=pl.BlockSpec((TB, hidden_dim, HW), lambda i: (i, 0, 0)),
            scratch_shapes=[
                pltpu.VMEM((c_in, HW + 2 * halo), g_flat.dtype),
                pltpu.VMEM((9 * c_in, HW), mm_dtype),
            ],
        ),
        compiler_params=pltpu.CompilerParams(
            dimension_semantics=("parallel",),
            vmem_limit_bytes=vmem_limit),
        cost_estimate=cost,
    )(g_flat, h_flat, wm, b_col, masks)

    # Free reshape back to PyTorch layout [B, N, hidden, H, W].
    return out.reshape(B, N, hidden_dim, H, W)


def _reference(g, h, weight, bias, *, hidden_dim):
    """Pure-JAX reference matching the PyTorch forward (exact f32 conv)."""
    B, N = g.shape[:2]
    x = jnp.concatenate([g, h], axis=2)
    BN = B * N
    x = x.reshape(BN, x.shape[2], x.shape[3], x.shape[4])  # NCHW
    v = lax.conv_general_dilated(
        x, weight, window_strides=(1, 1), padding=((1, 1), (1, 1)),
        dimension_numbers=("NCHW", "OIHW", "NCHW"),
        precision=lax.Precision.HIGHEST)
    v = v + bias.reshape(1, -1, 1, 1)
    v = v.reshape(B, N, 3 * hidden_dim, x.shape[2], x.shape[3])
    forget = jax.nn.sigmoid(v[:, :, :hidden_dim])
    update = jax.nn.sigmoid(v[:, :, hidden_dim:2 * hidden_dim])
    new = jnp.tanh(v[:, :, 2 * hidden_dim:])
    return forget * h * (1.0 - update) + update * new


if __name__ == "__main__":
    B, N = 2, 2
    g_dim, hidden_dim = 8, 8
    H = W = 16
    c_in = g_dim + hidden_dim
    c_out = 3 * hidden_dim

    key = jax.random.PRNGKey(0)
    kg, kh, kw, kb = jax.random.split(key, 4)

    g = jax.random.normal(kg, (B, N, g_dim, H, W), jnp.float32)
    h = jax.random.normal(kh, (B, N, hidden_dim, H, W), jnp.float32)

    # xavier_normal_ for a conv weight [C_out, C_in, 3, 3]
    fan_in, fan_out = c_in * 9, c_out * 9
    std = np.sqrt(2.0 / (fan_in + fan_out))
    weight = std * jax.random.normal(kw, (c_out, c_in, 3, 3), jnp.float32)
    # default nn.Conv2d bias init: U(-1/sqrt(fan_in), 1/sqrt(fan_in))
    bound = 1.0 / np.sqrt(fan_in)
    bias = jax.random.uniform(kb, (c_out,), jnp.float32, -bound, bound)

    new_h = hidden_reinforcer(g, h, weight, bias, hidden_dim=hidden_dim)
    new_h = jax.block_until_ready(new_h)

    ref = _reference(g, h, weight, bias, hidden_dim=hidden_dim)
    np.testing.assert_allclose(np.asarray(new_h), np.asarray(ref),
                               rtol=1e-4, atol=1e-4)
    print("KERNEL_OK")
</pallas_src>

<mosaic_0001>
module attributes {stable_mosaic.version = 11 : i64} {
  func.func @_reinforcer_kernel(%arg0: i32, %arg1: memref<1x8x256xf32, #tpu.memory_space<vmem>>, %arg2: memref<1x8x256xf32, #tpu.memory_space<vmem>>, %arg3: memref<24x144xf32, #tpu.memory_space<vmem>>, %arg4: memref<24x1xf32, #tpu.memory_space<vmem>>, %arg5: memref<2x256xf32, #tpu.memory_space<vmem>>, %arg6: memref<1x8x256xf32, #tpu.memory_space<vmem>>, %arg7: memref<16x512xf32, #tpu.memory_space<vmem>>, %arg8: memref<144x256xf32, #tpu.memory_space<vmem>>) attributes {dimension_semantics = [#tpu.dimension_semantics<parallel>], iteration_bounds = array<i64: 4>, scalar_prefetch = 0 : i64, scratch_operands = 2 : i64, tpu.core_type = #tpu.core_type<tc>, window_params = [{transform_indices = @transform_0, window_bounds = array<i64: 1, 8, 256>}, {transform_indices = @transform_1, window_bounds = array<i64: 1, 8, 256>}, {pipeline_mode = #tpu.pipeline_mode<synchronous>, transform_indices = @transform_2, window_bounds = array<i64: 24, 144>}, {pipeline_mode = #tpu.pipeline_mode<synchronous>, transform_indices = @transform_3, window_bounds = array<i64: 24, 1>}, {pipeline_mode = #tpu.pipeline_mode<synchronous>, transform_indices = @transform_4, window_bounds = array<i64: 2, 256>}, {transform_indices = @transform_5, window_bounds = array<i64: 1, 8, 256>}]} {
    %cst = arith.constant 0.000000e+00 : f32
    %0 = vector.broadcast %cst : f32 to vector<16x128xf32>
    %c0 = arith.constant 0 : index
    %c0_0 = arith.constant 0 : index
    %1 = vector.load %arg7[%c0, %c0_0] : memref<16x512xf32, #tpu.memory_space<vmem>>, vector<16x128xf32>
    tpu.vector_store %arg7[%c0, %c0_0], %0 {strides = array<i32>} : memref<16x512xf32, #tpu.memory_space<vmem>>, vector<16x128xf32>,
    %c0_1 = arith.constant 0 : index
    %c384 = arith.constant 384 : index
    %2 = vector.load %arg7[%c0_1, %c384] : memref<16x512xf32, #tpu.memory_space<vmem>>, vector<16x128xf32>
    tpu.vector_store %arg7[%c0_1, %c384], %0 {strides = array<i32>} : memref<16x512xf32, #tpu.memory_space<vmem>>, vector<16x128xf32>,
    %c0_2 = arith.constant 0 : index
    %c0_3 = arith.constant 0 : index
    %3 = vector.load %arg5[%c0_2, %c0_3] : memref<2x256xf32, #tpu.memory_space<vmem>>, vector<1x256xf32>
    %4 = vector.shape_cast %3 : vector<1x256xf32> to vector<1x256xf32>
    %5 = vector.broadcast %4 : vector<1x256xf32> to vector<16x256xf32>
    %c1 = arith.constant 1 : index
    %c0_4 = arith.constant 0 : index
    %6 = vector.load %arg5[%c1, %c0_4] : memref<2x256xf32, #tpu.memory_space<vmem>>, vector<1x256xf32>
    %7 = vector.shape_cast %6 : vector<1x256xf32> to vector<1x256xf32>
    %8 = vector.broadcast %7 : vector<1x256xf32> to vector<16x256xf32>
    %c0_5 = arith.constant 0 : index
    %c0_6 = arith.constant 0 : index
    %9 = vector.load %arg4[%c0_5, %c0_6] : memref<24x1xf32, #tpu.memory_space<vmem>>, vector<24x1xf32>
    %10 = vector.shape_cast %9 : vector<24x1xf32> to vector<24x1xf32>
    %11 = vector.broadcast %10 : vector<24x1xf32> to vector<24x256xf32>
    %c0_7 = arith.constant 0 : index
    %c0_8 = arith.constant 0 : index
    %12 = vector.load %arg3[%c0_7, %c0_8] : memref<24x144xf32, #tpu.memory_space<vmem>>, vector<24x144xf32>
    %c0_9 = arith.constant 0 : index
    %c0_10 = arith.constant 0 : index
    %c0_11 = arith.constant 0 : index
    %13 = vector.load %arg2[%c0_9, %c0_10, %c0_11] : memref<1x8x256xf32, #tpu.memory_space<vmem>>, vector<1x8x256xf32>
    %14 = vector.shape_cast %13 : vector<1x8x256xf32> to vector<8x256xf32>
    %c0_12 = arith.constant 0 : index
    %c0_13 = arith.constant 0 : index
    %c0_14 = arith.constant 0 : index
    %15 = vector.load %arg1[%c0_12, %c0_13, %c0_14] : memref<1x8x256xf32, #tpu.memory_space<vmem>>, vector<1x8x256xf32>
    %16 = vector.shape_cast %15 : vector<1x8x256xf32> to vector<8x256xf32>
    %c0_15 = arith.constant 0 : index
    %c128 = arith.constant 128 : index
    %17 = vector.load %arg7[%c0_15, %c128] : memref<16x512xf32, #tpu.memory_space<vmem>>, vector<8x256xf32>
    tpu.vector_store %arg7[%c0_15, %c128], %16 {strides = array<i32>} : memref<16x512xf32, #tpu.memory_space<vmem>>, vector<8x256xf32>,
    %c8 = arith.constant 8 : index
    %c128_16 = arith.constant 128 : index
    %18 = vector.load %arg7[%c8, %c128_16] : memref<16x512xf32, #tpu.memory_space<vmem>>, vector<8x256xf32>
    tpu.vector_store %arg7[%c8, %c128_16], %14 {strides = array<i32>} : memref<16x512xf32, #tpu.memory_space<vmem>>, vector<8x256xf32>,
    %c0_17 = arith.constant 0 : index
    %c111 = arith.constant 111 : index
    %19 = vector.load %arg7[%c0_17, %c111] : memref<16x512xf32, #tpu.memory_space<vmem>>, vector<16x256xf32>
    %20 = arith.mulf %19, %5 : vector<16x256xf32>
    %c0_18 = arith.constant 0 : index
    %c0_19 = arith.constant 0 : index
    %21 = vector.load %arg8[%c0_18, %c0_19] : memref<144x256xf32, #tpu.memory_space<vmem>>, vector<16x256xf32>
    tpu.vector_store %arg8[%c0_18, %c0_19], %20 {strides = array<i32>} : memref<144x256xf32, #tpu.memory_space<vmem>>, vector<16x256xf32>,
    %c0_20 = arith.constant 0 : index
    %c112 = arith.constant 112 : index
    %22 = vector.load %arg7[%c0_20, %c112] : memref<16x512xf32, #tpu.memory_space<vmem>>, vector<16x256xf32>
    %c16 = arith.constant 16 : index
    %c0_21 = arith.constant 0 : index
    %23 = vector.load %arg8[%c16, %c0_21] : memref<144x256xf32, #tpu.memory_space<vmem>>, vector<16x256xf32>
    tpu.vector_store %arg8[%c16, %c0_21], %22 {strides = array<i32>} : memref<144x256xf32, #tpu.memory_space<vmem>>, vector<16x256xf32>,
    %c0_22 = arith.constant 0 : index
    %c113 = arith.constant 113 : index
    %24 = vector.load %arg7[%c0_22, %c113] : memref<16x512xf32, #tpu.memory_space<vmem>>, vector<16x256xf32>
    %25 = arith.mulf %24, %8 : vector<16x256xf32>
    %c32 = arith.constant 32 : index
    %c0_23 = arith.constant 0 : index
    %26 = vector.load %arg8[%c32, %c0_23] : memref<144x256xf32, #tpu.memory_space<vmem>>, vector<16x256xf32>
    tpu.vector_store %arg8[%c32, %c0_23], %25 {strides = array<i32>} : memref<144x256xf32, #tpu.memory_space<vmem>>, vector<16x256xf32>,
    %c0_24 = arith.constant 0 : index
    %c127 = arith.constant 127 : index
    %27 = vector.load %arg7[%c0_24, %c127] : memref<16x512xf32, #tpu.memory_space<vmem>>, vector<16x256xf32>
    %28 = arith.mulf %27, %5 : vector<16x256xf32>
    %c48 = arith.constant 48 : index
    %c0_25 = arith.constant 0 : index
    %29 = vector.load %arg8[%c48, %c0_25] : memref<144x256xf32, #tpu.memory_space<vmem>>, vector<16x256xf32>
    tpu.vector_store %arg8[%c48, %c0_25], %28 {strides = array<i32>} : memref<144x256xf32, #tpu.memory_space<vmem>>, vector<16x256xf32>,
    %c0_26 = arith.constant 0 : index
    %c128_27 = arith.constant 128 : index
    %30 = vector.load %arg7[%c0_26, %c128_27] : memref<16x512xf32, #tpu.memory_space<vmem>>, vector<16x256xf32>
    %c64 = arith.constant 64 : index
    %c0_28 = arith.constant 0 : index
    %31 = vector.load %arg8[%c64, %c0_28] : memref<144x256xf32, #tpu.memory_space<vmem>>, vector<16x256xf32>
    tpu.vector_store %arg8[%c64, %c0_28], %30 {strides = array<i32>} : memref<144x256xf32, #tpu.memory_space<vmem>>, vector<16x256xf32>,
    %c0_29 = arith.constant 0 : index
    %c129 = arith.constant 129 : index
    %32 = vector.load %arg7[%c0_29, %c129] : memref<16x512xf32, #tpu.memory_space<vmem>>, vector<16x256xf32>
    %33 = arith.mulf %32, %8 : vector<16x256xf32>
    %c80 = arith.constant 80 : index
    %c0_30 = arith.constant 0 : index
    %34 = vector.load %arg8[%c80, %c0_30] : memref<144x256xf32, #tpu.memory_space<vmem>>, vector<16x256xf32>
    tpu.vector_store %arg8[%c80, %c0_30], %33 {strides = array<i32>} : memref<144x256xf32, #tpu.memory_space<vmem>>, vector<16x256xf32>,
    %c0_31 = arith.constant 0 : index
    %c143 = arith.constant 143 : index
    %35 = vector.load %arg7[%c0_31, %c143] : memref<16x512xf32, #tpu.memory_space<vmem>>, vector<16x256xf32>
    %36 = arith.mulf %35, %5 : vector<16x256xf32>
    %c96 = arith.constant 96 : index
    %c0_32 = arith.constant 0 : index
    %37 = vector.load %arg8[%c96, %c0_32] : memref<144x256xf32, #tpu.memory_space<vmem>>, vector<16x256xf32>
    tpu.vector_store %arg8[%c96, %c0_32], %36 {strides = array<i32>} : memref<144x256xf32, #tpu.memory_space<vmem>>, vector<16x256xf32>,
    %c0_33 = arith.constant 0 : index
    %c144 = arith.constant 144 : index
    %38 = vector.load %arg7[%c0_33, %c144] : memref<16x512xf32, #tpu.memory_space<vmem>>, vector<16x256xf32>
    %c112_34 = arith.constant 112 : index
    %c0_35 = arith.constant 0 : index
    %39 = vector.load %arg8[%c112_34, %c0_35] : memref<144x256xf32, #tpu.memory_space<vmem>>, vector<16x256xf32>
    tpu.vector_store %arg8[%c112_34, %c0_35], %38 {strides = array<i32>} : memref<144x256xf32, #tpu.memory_space<vmem>>, vector<16x256xf32>,
    %c0_36 = arith.constant 0 : index
    %c145 = arith.constant 145 : index
    %40 = vector.load %arg7[%c0_36, %c145] : memref<16x512xf32, #tpu.memory_space<vmem>>, vector<16x256xf32>
    %41 = arith.mulf %40, %8 : vector<16x256xf32>
    %c128_37 = arith.constant 128 : index
    %c0_38 = arith.constant 0 : index
    %42 = vector.load %arg8[%c128_37, %c0_38] : memref<144x256xf32, #tpu.memory_space<vmem>>, vector<16x256xf32>
    tpu.vector_store %arg8[%c128_37, %c0_38], %41 {strides = array<i32>} : memref<144x256xf32, #tpu.memory_space<vmem>>, vector<16x256xf32>,
    %c0_39 = arith.constant 0 : index
    %c0_40 = arith.constant 0 : index
    %43 = vector.load %arg8[%c0_39, %c0_40] : memref<144x256xf32, #tpu.memory_space<vmem>>, vector<144x256xf32>
    %cst_41 = arith.constant dense<0.000000e+00> : vector<24x256xf32>
    %44 = tpu.matmul %12, %43, %cst_41 {dimension_numbers = #tpu.dot_dimension_numbers<[1], [0], [0], [1], [0, 0, 1, 1], [], []>} : vector<24x144xf32>, vector<144x256xf32>, vector<24x256xf32> -> vector<24x256xf32>
    %45 = arith.addf %44, %11 : vector<24x256xf32>
    %46 = vector.extract_strided_slice %45 {offsets = [0, 0], sizes = [8, 256], strides = [1, 1]} : vector<24x256xf32> to vector<8x256xf32>
    %47 = arith.negf %46 : vector<8x256xf32>
    %48 = math.exp %47 : vector<8x256xf32>
    %cst_42 = arith.constant 1.000000e+00 : f32
    %49 = vector.broadcast %cst_42 : f32 to vector<8x256xf32>
    %50 = arith.addf %49, %48 : vector<8x256xf32>
    %51 = arith.divf %49, %50 : vector<8x256xf32>
    %52 = vector.extract_strided_slice %45 {offsets = [8, 0], sizes = [8, 256], strides = [1, 1]} : vector<24x256xf32> to vector<8x256xf32>
    %53 = arith.negf %52 : vector<8x256xf32>
    %54 = math.exp %53 : vector<8x256xf32>
    %cst_43 = arith.constant 1.000000e+00 : f32
    %55 = vector.broadcast %cst_43 : f32 to vector<8x256xf32>
    %56 = arith.addf %55, %54 : vector<8x256xf32>
    %57 = arith.divf %55, %56 : vector<8x256xf32>
    %58 = vector.extract_strided_slice %45 {offsets = [16, 0], sizes = [8, 256], strides = [1, 1]} : vector<24x256xf32> to vector<8x256xf32>
    %59 = math.tanh %58 : vector<8x256xf32>
    %60 = arith.mulf %51, %14 : vector<8x256xf32>
    %cst_44 = arith.constant 1.000000e+00 : f32
    %61 = vector.broadcast %cst_44 : f32 to vector<8x256xf32>
    %62 = arith.subf %61, %57 : vector<8x256xf32>
    %63 = arith.mulf %60, %62 : vector<8x256xf32>
    %64 = arith.mulf %57, %59 : vector<8x256xf32>
    %65 = arith.addf %63, %64 : vector<8x256xf32>
    %c0_45 = arith.constant 0 : index
    %c0_46 = arith.constant 0 : index
    %c0_47 = arith.constant 0 : index
    %66 = vector.load %arg6[%c0_45, %c0_46, %c0_47] : memref<1x8x256xf32, #tpu.memory_space<vmem>>, vector<1x8x256xf32>
    %67 = vector.shape_cast %66 : vector<1x8x256xf32> to vector<8x256xf32>
    %68 = vector.shape_cast %65 : vector<8x256xf32> to vector<1x8x256xf32>
    tpu.vector_store %arg6[%c0_45, %c0_46, %c0_47], %68 {strides = array<i32>} : memref<1x8x256xf32, #tpu.memory_space<vmem>>, vector<1x8x256xf32>,
    return
  }
  func.func @transform_0(%arg0: i32) -> (i32, i32, i32) {
    %c0_i32 = arith.constant 0 : i32
    %c0_i32_0 = arith.constant 0 : i32
    %c0_i32_1 = arith.constant 0 : i32
    return %arg0, %c0_i32, %c0_i32_0 : i32, i32, i32
  }
  func.func @transform_1(%arg0: i32) -> (i32, i32, i32) {
    %c0_i32 = arith.constant 0 : i32
    %c0_i32_0 = arith.constant 0 : i32
    %c0_i32_1 = arith.constant 0 : i32
    return %arg0, %c0_i32, %c0_i32_0 : i32, i32, i32
  }
  func.func @transform_2(%arg0: i32) -> (i32, i32) {
    %c0_i32 = arith.constant 0 : i32
    %c0_i32_0 = arith.constant 0 : i32
    %c0_i32_1 = arith.constant 0 : i32
    return %c0_i32, %c0_i32_0 : i32, i32
  }
  func.func @transform_3(%arg0: i32) -> (i32, i32) {
    %c0_i32 = arith.constant 0 : i32
    %c0_i32_0 = arith.constant 0 : i32
    %c0_i32_1 = arith.constant 0 : i32
    return %c0_i32, %c0_i32_0 : i32, i32
  }
  func.func @transform_4(%arg0: i32) -> (i32, i32) {
    %c0_i32 = arith.constant 0 : i32
    %c0_i32_0 = arith.constant 0 : i32
    %c0_i32_1 = arith.constant 0 : i32
    return %c0_i32, %c0_i32_0 : i32, i32
  }
  func.func @transform_5(%arg0: i32) -> (i32, i32, i32) {
    %c0_i32 = arith.constant 0 : i32
    %c0_i32_0 = arith.constant 0 : i32
    %c0_i32_1 = arith.constant 0 : i32
    return %arg0, %c0_i32, %c0_i32_0 : i32, i32, i32
  }
}

</mosaic_0001>

<llo_original>
// kernel: tpu_custom_call.1
$region0: #{tpu_custom_call.1}
  #allocation0 [shape = 'u32[]', space=smem, size = 0x4, offset = 0x4, fixed_abs, tag = 'smem constant byte address 0x4 - core index']
  #allocation1 [shape = 'u32[144,128]{1,0:T(1,128)}', space=vmem, size = 0x12000, scoped, tag = 'internal scratch']
  #allocation2 [shape = 'f32[16,512]{1,0:T(8,128)}', space=vmem, size = 0x8000, scoped, tag = 'scratch operand']
  #allocation3 [shape = 'f32[144,256]{1,0:T(8,128)}', space=vmem, size = 0x24000, scoped, tag = 'scratch operand']
  %s0 = inlined_call_operand.hbm [shape: f32[4,8,256], index: 0, kind: input, shape index: {}]
  %s1 = inlined_call_operand.hbm [shape: f32[4,8,256], index: 1, kind: input, shape index: {}]
  %s2 = inlined_call_operand.hbm [shape: f32[24,144], index: 2, kind: input, shape index: {}]
  %s3 = inlined_call_operand.vmem [shape: f32[24,1], index: 3, kind: input, shape index: {}]
  %s4 = inlined_call_operand.vmem [shape: f32[2,256], index: 4, kind: input, shape index: {}]
  %s5 = inlined_call_operand.hbm [shape: f32[4,8,256], index: 5, kind: output, shape index: {}]
  %s6 = sld [smem:[#allocation0]]
  $region65: #{tpu_custom_call.1} parent=0
    _
  %s8 = ssub.s32 1, %s6
  %s9 = scalar_select 0, %s8, %s6
  $region1: #{tpu_custom_call.1} parent=0
    #allocation4 [shape = 'u8[16384]{0}', space=vmem, size = 0x4000, scoped, tag = 'input window, operand 0']
    #allocation5 [shape = 's32[2]{0}', space=sflag, size = 0x8, scoped, tag = 'scoped memory for tpu_custom_call.1']
    #allocation6 [shape = 's32[2]{0}', space=sflag, size = 0x8, scoped, tag = 'scoped memory for tpu_custom_call.1']
    #allocation7 [shape = 'u8[16384]{0}', space=vmem, size = 0x4000, scoped, tag = 'input window, operand 1']
    #allocation8 [shape = 's32[2]{0}', space=sflag, size = 0x8, scoped, tag = 'scoped memory for tpu_custom_call.1']
    #allocation9 [shape = 'u8[24576]{0}', space=vmem, size = 0x6000, scoped, tag = 'input window, operand 2, single buffered']
    #allocation10 [shape = 'u8[16384]{0}', space=vmem, size = 0x4000, scoped, tag = 'output window, operand 0']
    %10 = vsyncpa [#allocation5], 0
    %s11 = scalar_lea.sflag [#allocation5], 1
    %12 = vsyncpa %s11, 0
    %13 = vsyncpa [#allocation8], 0
    %s14 = scalar_lea.sflag [#allocation8], 1
    %15 = vsyncpa %s14, 0
    %16 = vsyncpa [#allocation6], 0
    %s17 = scalar_lea.sflag [#allocation6], 1
    %18 = vsyncpa %s17, 0
    loop: start=0, step=1, limit=6
    $region2: #{tpu_custom_call.1} parent=1 // loop_pre_header
      _
    $region3: #{tpu_custom_call.1} parent=1 // loop_header
      %s20 = sphi 0, %s24
      %p21 = scmp.ge.s32.totalorder %s20, 6
      %s30 = sphi 0, %s32
      %s33 = sphi 0, %s30
      %s34 = sphi 0, %s33
      %s50 = sphi 0, %s34
      %s56 = sphi 0, %s58
      %s59 = sphi 0, %s56
      %s60 = sphi 0, %s59
      %s76 = sphi 0, %s60
      %s80 = sphi 0, %s80
      %s82 = sphi 0, %s80
      %s83 = sphi 0, %s82
      %s97 = sphi 0, %s83
      %s101 = sphi 0, %s101
      %s103 = sphi 0, %s101
      %s104 = sphi 0, %s103
      %s118 = sphi 0, %s104
      %s122 = sphi 0, %s122
      %s124 = sphi 0, %s122
      %s125 = sphi 0, %s124
      %s139 = sphi 0, %s125
      %s145 = sphi 0, %s147
      %s148 = sphi 0, %s145
      %s149 = sphi 0, %s148
      %s165 = sphi 0, %s149
    $region4: #{tpu_custom_call.1} parent=1 // loop_header_branch
      %23 = sbr.rel (%p21) target = $region8
    $region5: #{tpu_custom_call.1} parent=1 // loop_body
      %s25 = ssub.s32 %s20, 1
      %s26 = ssub.s32 %s20, 2
      %s27 = sadd.s32 %s20, 1
      %s28 = ssub.s32 %s20, %s27
      %p29 = scmp.eq.s32.totalorder %s28, 0
      %s31 = sadd.s32 %s30, 1
      %s32 = scalar_select %p29, %s30, %s31
      %p35 = pneg %p29
      %p36 = scmp.eq.s32.totalorder %s20, 3
      %p37 = por %p35, %p36
      %p38 = scmp.ne.s32.totalorder %s30, %s33
      %p39 = scmp.eq.s32.totalorder %s20, 0
      %p40 = por %p38, %p39
      %p41 = scmp.ne.s32.totalorder %s30, %s33
      %p42 = scmp.eq.s32.totalorder %s25, 3
      %p43 = por %p41, %p42
      %p44 = scmp.ne.s32.totalorder %s33, %s34
      %p45 = scmp.eq.s32.totalorder %s25, 0
      %p46 = por %p44, %p45
      %p47 = scmp.ne.s32.totalorder %s33, %s34
      %p48 = scmp.eq.s32.totalorder %s26, 3
      %p49 = por %p47, %p48
      %p51 = scmp.ne.s32.totalorder %s34, %s50
      %p52 = scmp.eq.s32.totalorder %s26, 0
      %p53 = por %p51, %p52
      %s54 = ssub.s32 %s20, %s27
      %p55 = scmp.eq.s32.totalorder %s54, 0
      %s57 = sadd.s32 %s56, 1
      %s58 = scalar_select %p55, %s56, %s57
      %p61 = pneg %p55
      %p62 = scmp.eq.s32.totalorder %s20, 3
      %p63 = por %p61, %p62
      %p64 = scmp.ne.s32.totalorder %s56, %s59
      %p65 = scmp.eq.s32.totalorder %s20, 0
      %p66 = por %p64, %p65
      %p67 = scmp.ne.s32.totalorder %s56, %s59
      %p68 = scmp.eq.s32.totalorder %s25, 3
      %p69 = por %p67, %p68
      %p70 = scmp.ne.s32.totalorder %s59, %s60
      %p71 = scmp.eq.s32.totalorder %s25, 0
      %p72 = por %p70, %p71
      %p73 = scmp.ne.s32.totalorder %s59, %s60
      %p74 = scmp.eq.s32.totalorder %s26, 3
      %p75 = por %p73, %p74
      %p77 = scmp.ne.s32.totalorder %s60, %s76
      %p78 = scmp.eq.s32.totalorder %s26, 0
      %p79 = por %p77, %p78
      %s81 = sadd.s32 %s80, 1
      %p84 = scmp.eq.s32.totalorder %s20, 3
      %p85 = scmp.ne.s32.totalorder %s80, %s82
      %p86 = scmp.eq.s32.totalorder %s20, 0
      %p87 = por %p85, %p86
      %p88 = scmp.ne.s32.totalorder %s80, %s82
      %p89 = scmp.eq.s32.totalorder %s25, 3
      %p90 = por %p88, %p89
      %p91 = scmp.ne.s32.totalorder %s82, %s83
      %p92 = scmp.eq.s32.totalorder %s25, 0
      %p93 = por %p91, %p92
      %p94 = scmp.ne.s32.totalorder %s82, %s83
      %p95 = scmp.eq.s32.totalorder %s26, 3
      %p96 = por %p94, %p95
      %p98 = scmp.ne.s32.totalorder %s83, %s97
      %p99 = scmp.eq.s32.totalorder %s26, 0
      %p100 = por %p98, %p99
      %s102 = sadd.s32 %s101, 1
      %p105 = scmp.eq.s32.totalorder %s20, 3
      %p106 = scmp.ne.s32.totalorder %s101, %s103
      %p107 = scmp.eq.s32.totalorder %s20, 0
      %p108 = por %p106, %p107
      %p109 = scmp.ne.s32.totalorder %s101, %s103
      %p110 = scmp.eq.s32.totalorder %s25, 3
      %p111 = por %p109, %p110
      %p112 = scmp.ne.s32.totalorder %s103, %s104
      %p113 = scmp.eq.s32.totalorder %s25, 0
      %p114 = por %p112, %p113
      %p115 = scmp.ne.s32.totalorder %s103, %s104
      %p116 = scmp.eq.s32.totalorder %s26, 3
      %p117 = por %p115, %p116
      %p119 = scmp.ne.s32.totalorder %s104, %s118
      %p120 = scmp.eq.s32.totalorder %s26, 0
      %p121 = por %p119, %p120
      %s123 = sadd.s32 %s122, 1
      %p126 = scmp.eq.s32.totalorder %s20, 3
      %p127 = scmp.ne.s32.totalorder %s122, %s124
      %p128 = scmp.eq.s32.totalorder %s20, 0
      %p129 = por %p127, %p128
      %p130 = scmp.ne.s32.totalorder %s122, %s124
      %p131 = scmp.eq.s32.totalorder %s25, 3
      %p132 = por %p130, %p131
      %p133 = scmp.ne.s32.totalorder %s124, %s125
      %p134 = scmp.eq.s32.totalorder %s25, 0
      %p135 = por %p133, %p134
      %p136 = scmp.ne.s32.totalorder %s124, %s125
      %p137 = scmp.eq.s32.totalorder %s26, 3
      %p138 = por %p136, %p137
      %p140 = scmp.ne.s32.totalorder %s125, %s139
      %p141 = scmp.eq.s32.totalorder %s26, 0
      %p142 = por %p140, %p141
      %s143 = ssub.s32 %s20, %s27
      %p144 = scmp.eq.s32.totalorder %s143, 0
      %s146 = sadd.s32 %s145, 1
      %s147 = scalar_select %p144, %s145, %s146
      %p150 = pneg %p144
      %p151 = scmp.eq.s32.totalorder %s20, 3
      %p152 = por %p150, %p151
      %p153 = scmp.ne.s32.totalorder %s145, %s148
      %p154 = scmp.eq.s32.totalorder %s20, 0
      %p155 = por %p153, %p154
      %p156 = scmp.ne.s32.totalorder %s145, %s148
      %p157 = scmp.eq.s32.totalorder %s25, 3
      %p158 = por %p156, %p157
      %p159 = scmp.ne.s32.totalorder %s148, %s149
      %p160 = scmp.eq.s32.totalorder %s25, 0
      %p161 = por %p159, %p160
      %p162 = scmp.ne.s32.totalorder %s148, %s149
      %p163 = scmp.eq.s32.totalorder %s26, 3
      %p164 = por %p162, %p163
      %p166 = scmp.ne.s32.totalorder %s149, %s165
      %p167 = scmp.eq.s32.totalorder %s26, 0
      %p168 = por %p166, %p167
      %p169 = scmp.le.s32.totalorder 1, %s20
      %p170 = scmp.lt.s32.totalorder %s20, 5
      %p171 = pnand %p169, %p170
      %p172 = pneg %p171
      // Predicated region
      $region9: #{tpu_custom_call.1} parent=5 // pred_check
        _
      $region10: #{tpu_custom_call.1} parent=5 // pred_check_branch
        %174 = sbr.rel (%p171) target = $region12
      $region11: #{tpu_custom_call.1} parent=5 // pred_region
        %s175 = ssub.s32 %s20, 1
        // Predicated region
        $region13: #{tpu_custom_call.1} parent=11 // pred_check
          %p176 = pneg %p93
        $region14: #{tpu_custom_call.1} parent=11 // pred_check_branch
          %178 = sbr.rel (%p176) target = $region16
        $region15: #{tpu_custom_call.1} parent=11 // pred_region
          %s180 = ssub.s32 768, 768
          %181 = vsyncadd [#allocation8], %s180
          %s182 = sshll.u32 [#allocation9], 4
          %s183 = int_to_ptr.vmem [resolvable:$true] %s182
          %188 = dma.hbm_to_vmem [thread:$0]  %s2, 768, %s183, [#allocation8], 256, 256, 16
        $region16: #{tpu_custom_call.1} parent=11 // pred_fallthru
          _
        // Predicated region
        $region17: #{tpu_custom_call.1} parent=11 // pred_check
          %p189 = pneg %p114
        $region18: #{tpu_custom_call.1} parent=11 // pred_check_branch
          %191 = sbr.rel (%p189) target = $region20
        $region19: #{tpu_custom_call.1} parent=11 // pred_region
          _
        $region20: #{tpu_custom_call.1} parent=11 // pred_fallthru
          _
        // Predicated region
        $region21: #{tpu_custom_call.1} parent=11 // pred_check
          %p192 = pneg %p135
        $region22: #{tpu_custom_call.1} parent=11 // pred_check_branch
          %194 = sbr.rel (%p192) target = $region24
        $region23: #{tpu_custom_call.1} parent=11 // pred_region
          _
        $region24: #{tpu_custom_call.1} parent=11 // pred_fallthru
          _
      $region12: #{tpu_custom_call.1} parent=5 // pred_fallthru
        _
      %p195 = scmp.lt.s32.totalorder %s20, 4
      // Predicated region
      $region25: #{tpu_custom_call.1} parent=5 // pred_check
        %p196 = pneg %p195
      $region26: #{tpu_custom_call.1} parent=5 // pred_check_branch
        %198 = sbr.rel (%p196) target = $region28
      $region27: #{tpu_custom_call.1} parent=5 // pred_region
        // Predicated region
        $region29: #{tpu_custom_call.1} parent=27 // pred_check
          %p199 = pneg %p40
        $region30: #{tpu_custom_call.1} parent=27 // pred_check_branch
          %201 = sbr.rel (%p199) target = $region32
        $region31: #{tpu_custom_call.1} parent=27 // pred_region
          %s202 = sand.u32 %s30, 1
          %s203 = scalar_lea.sflag [#allocation5], %s202
          %s204 = sand.u32 %s30, 1
          %s205 = smul.addr %s204, 16
          %s206 = scalar_lea.vmem [#allocation4], %s205
          %s208 = ssub.s32 256, 256
          %209 = vsyncadd %s203, %s208
          %s210 = smul.addr %s20, 2
          %s211 = smul.addr %s210, 128
          %s212 = scalar_lea.hbm %s0, %s211
          %s214 = sshll.u32 %s206, 4
          %s215 = int_to_ptr.vmem [resolvable:$true] %s214
          %217 = dma.hbm_to_vmem [thread:$0]  %s212, 256, %s215, %s203
        $region32: #{tpu_custom_call.1} parent=27 // pred_fallthru
          _
        // Predicated region
        $region33: #{tpu_custom_call.1} parent=27 // pred_check
          %p218 = pneg %p66
        $region34: #{tpu_custom_call.1} parent=27 // pred_check_branch
          %220 = sbr.rel (%p218) target = $region36
        $region35: #{tpu_custom_call.1} parent=27 // pred_region
          %s221 = sand.u32 %s20, 1
          %s222 = scalar_lea.sflag [#allocation8], %s221
          %s223 = sand.u32 %s56, 1
          %s224 = smul.addr %s223, 16
          %s225 = scalar_lea.vmem [#allocation7], %s224
          %s227 = ssub.s32 256, 256
          %228 = vsyncadd %s222, %s227
          %s229 = smul.addr %s20, 2
          %s230 = smul.addr %s229, 128
          %s231 = scalar_lea.hbm %s1, %s230
          %s233 = sshll.u32 %s225, 4
          %s234 = int_to_ptr.vmem [resolvable:$true] %s233
          %236 = dma.hbm_to_vmem [thread:$0]  %s231, 256, %s234, %s222
        $region36: #{tpu_custom_call.1} parent=27 // pred_fallthru
          _
      $region28: #{tpu_custom_call.1} parent=5 // pred_fallthru
        _
      %p237 = scmp.le.s32.totalorder 1, %s20
      %p238 = scmp.lt.s32.totalorder %s20, 5
      %p239 = pnand %p237, %p238
      %p240 = pneg %p239
      // Predicated region
      $region37: #{tpu_custom_call.1} parent=5 // pred_check
        _
      $region38: #{tpu_custom_call.1} parent=5 // pred_check_branch
        %242 = sbr.rel (%p239) target = $region40
      $region39: #{tpu_custom_call.1} parent=5 // pred_region
        %s243 = ssub.s32 %s20, 1
        %s244 = sand.u32 %s33, 1
        %s245 = scalar_lea.sflag [#allocation5], %s244
        %s246 = sand.u32 %s33, 1
        %s247 = smul.addr %s246, 16
        %s248 = scalar_lea.vmem [#allocation4], %s247
        // Predicated region
        $region41: #{tpu_custom_call.1} parent=39 // pred_check
          %p249 = pneg %p46
        $region42: #{tpu_custom_call.1} parent=39 // pred_check_branch
          %251 = sbr.rel (%p249) target = $region44
        $region43: #{tpu_custom_call.1} parent=39 // pred_region
          %252 = dma.done %s245, 256
        $region44: #{tpu_custom_call.1} parent=39 // pred_fallthru
          _
        %s253 = sand.u32 %s25, 1
        %s254 = scalar_lea.sflag [#allocation8], %s253
        %s255 = sand.u32 %s59, 1
        %s256 = smul.addr %s255, 16
        %s257 = scalar_lea.vmem [#allocation7], %s256
        // Predicated region
        $region45: #{tpu_custom_call.1} parent=39 // pred_check
          %p258 = pneg %p72
        $region46: #{tpu_custom_call.1} parent=39 // pred_check_branch
          %260 = sbr.rel (%p258) target = $region48
        $region47: #{tpu_custom_call.1} parent=39 // pred_region
          %261 = dma.done %s254, 256
        $region48: #{tpu_custom_call.1} parent=39 // pred_fallthru
          _
        // Predicated region
        $region49: #{tpu_custom_call.1} parent=39 // pred_check
          %p262 = pneg %p93
        $region50: #{tpu_custom_call.1} parent=39 // pred_check_branch
          %264 = sbr.rel (%p262) target = $region52
        $region51: #{tpu_custom_call.1} parent=39 // pred_region
          %265 = dma.done [#allocation8], 768
        $region52: #{tpu_custom_call.1} parent=39 // pred_fallthru
          _
        %s266 = sand.u32 %s33, 1
        %s267 = scalar_lea.sflag [#allocation5], %s266
        %s268 = sand.u32 %s33, 1
        %s269 = smul.addr %s268, 16
        %s270 = scalar_lea.vmem [#allocation4], %s269
        %p271 = pneg %p46
        %p272 = pneg %p43
        %s273 = sand.u32 %s25, 1
        %s274 = scalar_lea.sflag [#allocation8], %s273
        %s275 = sand.u32 %s59, 1
        %s276 = smul.addr %s275, 16
        %s277 = scalar_lea.vmem [#allocation7], %s276
        %p278 = pneg %p72
        %p279 = pneg %p69
        %p280 = pneg %p93
        %p281 = pneg %p90
        %p282 = pneg %p114
        %p283 = pneg %p111
        %p284 = pneg %p135
        %p285 = pneg %p132
        %p286 = pneg %p161
        %p287 = pneg %p158
        %s288 = sand.u32 %s148, 1
        %s289 = scalar_lea.sflag [#allocation6], %s288
        %s290 = sand.u32 %s148, 1
        %s291 = smul.addr %s290, 16
        %s292 = scalar_lea.vmem [#allocation10], %s291
        %293 = vst [vmem:[#allocation2] sm:$0xff] 0.0
        %294 = vst [vmem:[#allocation2 + $0x20] sm:$0xff] 0.0
        %295 = vst [vmem:[#allocation2 + $0x18] sm:$0xff] 0.0
        %296 = vst [vmem:[#allocation2 + $0x38] sm:$0xff] 0.0
        %v297 = vld [vmem:[%s4] ss:$2 sm:$0x3]
        %v299 = vlaneseq
        %v300 = vshrl.u32 %v299, 7
        %v301 = vsub.s32 0, %v300
        %v302 = vrot.slane %v297, %v301
        %v303 = vlaneseq
        %v304 = vshrl.u32 %v303, 7
        %v305 = vsub.s32 1, %v304
        %v306 = vrot.slane %v297, %v305
        %s307 = scalar_lea.vmem %s4, 1
        %v308 = vld [vmem:[%s307] ss:$2 sm:$0x3]
        %v310 = vlaneseq
        %v311 = vshrl.u32 %v310, 7
        %v312 = vsub.s32 0, %v311
        %v313 = vrot.slane %v308, %v312
        %v314 = vlaneseq
        %v315 = vshrl.u32 %v314, 7
        %v316 = vsub.s32 1, %v315
        %v317 = vrot.slane %v308, %v316
        %v318 = vld [vmem:[%s3] sm:$0xff]
        %v319 = vld [vmem:[%s3 + $0x8] sm:$0xff]
        %v320 = vld [vmem:[%s3 + $0x10] sm:$0xff]
        %322 = vset.pattern.permute.xlu0 0
        %323 = vperm.xlu0 %322, %v318
        %v324 = vpop.permute.xlu0 %323
        %327 = vset.pattern.permute.xlu0 0
        %328 = vperm.xlu0 %327, %v319
        %v329 = vpop.permute.xlu0 %328
        %332 = vset.pattern.permute.xlu0 0
        %333 = vperm.xlu0 %332, %v320
        %v334 = vpop.permute.xlu0 %333
        %v336 = vld [vmem:[#allocation9] sm:$0xff]
        %v337 = vld [vmem:[#allocation9 + $0x8] sm:$0xff]
        %v338 = vld [vmem:[#allocation9 + $0x10] sm:$0xff]
        %v339 = vld [vmem:[#allocation9 + $0x18] sm:$0xff]
        %v340 = vld [vmem:[#allocation9 + $0x20] sm:$0xff]
        %v341 = vld [vmem:[#allocation9 + $0x28] sm:$0xff]
        %v342 = vld [vmem:[%s257] sm:$0xff]
        %v343 = vld [vmem:[%s257 + $0x8] sm:$0xff]
        %v344 = vld [vmem:[%s248] sm:$0xff]
        %v345 = vld [vmem:[%s248 + $0x8] sm:$0xff]
        %346 = vst [vmem:[#allocation2 + $0x8] sm:$0xff] %v344
        %347 = vst [vmem:[#allocation2 + $0x10] sm:$0xff] %v345
        %348 = vst [vmem:[#allocation2 + $0x28] sm:$0xff] %v342
        %349 = vst [vmem:[#allocation2 + $0x30] sm:$0xff] %v343
        %v350 = vld [vmem:[#allocation2] sm:$0xff]
        %v351 = vld [vmem:[#allocation2 + $0x8] sm:$0xff]
        %v352 = vld [vmem:[#allocation2 + $0x10] sm:$0xff]
        %v353 = vld [vmem:[#allocation2 + $0x20] sm:$0xff]
        %v354 = vld [vmem:[#allocation2 + $0x28] sm:$0xff]
        %v355 = vld [vmem:[#allocation2 + $0x30] sm:$0xff]
        %356 = vrot.lane.b32.xlu0 %v302, 111
        %v357 = vpop.permute.xlu0 %356
        %358 = vrot.lane.b32.xlu0 %v306, 111
        %v359 = vpop.permute.xlu0 %358
        %vm360 = vcmask 908288
        %v361 = vsel %vm360, %v357, %v359
        %v365 = vmul.f32 %v350, %v357
        %v366 = vmul.f32 %v351, %v361
        %v367 = vmul.f32 %v352, %v359
        %v368 = vmul.f32 %v353, %v357
        %v369 = vmul.f32 %v354, %v361
        %v370 = vmul.f32 %v355, %v359
        %377 = vrot.lane.b32.xlu0 %v365, 17
        %v378 = vpop.permute.xlu0 %377
        %379 = vrot.lane.b32.xlu0 %v366, 17
        %v380 = vpop.permute.xlu0 %379
        %381 = vrot.lane.b32.xlu0 %v367, 17
        %v382 = vpop.permute.xlu0 %381
        %383 = vrot.lane.b32.xlu0 %v368, 17
        %v384 = vpop.permute.xlu0 %383
        %385 = vrot.lane.b32.xlu0 %v369, 17
        %v386 = vpop.permute.xlu0 %385
        %387 = vrot.lane.b32.xlu0 %v370, 17
        %v388 = vpop.permute.xlu0 %387
        %vm389 = vcmask 138240
        %v390 = vsel %vm389, %v378, %v380
        %v391 = vsel %vm389, %v380, %v382
        %v392 = vsel %vm389, %v384, %v386
        %v393 = vsel %vm389, %v386, %v388
        %398 = vst [vmem:[#allocation3] sm:$0xff] %v390
        %399 = vst [vmem:[#allocation3 + $0x8] sm:$0xff] %v391
        %400 = vst [vmem:[#allocation3 + $0x10] sm:$0xff] %v392
        %401 = vst [vmem:[#allocation3 + $0x18] sm:$0xff] %v393
        %v402 = vld [vmem:[#allocation2] sm:$0xff]
        %v403 = vld [vmem:[#allocation2 + $0x8] sm:$0xff]
        %v404 = vld [vmem:[#allocation2 + $0x10] sm:$0xff]
        %v405 = vld [vmem:[#allocation2 + $0x20] sm:$0xff]
        %v406 = vld [vmem:[#allocation2 + $0x28] sm:$0xff]
        %v407 = vld [vmem:[#allocation2 + $0x30] sm:$0xff]
        %414 = vrot.lane.b32.xlu0 %v402, 16
        %v415 = vpop.permute.xlu0 %414
        %416 = vrot.lane.b32.xlu0 %v403, 16
        %v417 = vpop.permute.xlu0 %416
        %418 = vrot.lane.b32.xlu0 %v404, 16
        %v419 = vpop.permute.xlu0 %418
        %420 = vrot.lane.b32.xlu0 %v405, 16
        %v421 = vpop.permute.xlu0 %420
        %422 = vrot.lane.b32.xlu0 %v406, 16
        %v423 = vpop.permute.xlu0 %422
        %424 = vrot.lane.b32.xlu0 %v407, 16
        %v425 = vpop.permute.xlu0 %424
        %vm426 = vcmask 130048
        %v427 = vsel %vm426, %v415, %v417
        %v428 = vsel %vm426, %v417, %v419
        %v429 = vsel %vm426, %v421, %v423
        %v430 = vsel %vm426, %v423, %v425
        %435 = vst [vmem:[#allocation3 + $0x20] sm:$0xff] %v427
        %436 = vst [vmem:[#allocation3 + $0x28] sm:$0xff] %v428
        %437 = vst [vmem:[#allocation3 + $0x30] sm:$0xff] %v429
        %438 = vst [vmem:[#allocation3 + $0x38] sm:$0xff] %v430
        %v439 = vld [vmem:[#allocation2] sm:$0xff]
        %v440 = vld [vmem:[#allocation2 + $0x8] sm:$0xff]
        %v441 = vld [vmem:[#allocation2 + $0x10] sm:$0xff]
        %v442 = vld [vmem:[#allocation2 + $0x20] sm:$0xff]
        %v443 = vld [vmem:[#allocation2 + $0x28] sm:$0xff]
        %v444 = vld [vmem:[#allocation2 + $0x30] sm:$0xff]
        %445 = vrot.lane.b32.xlu0 %v313, 113
        %v446 = vpop.permute.xlu0 %445
        %447 = vrot.lane.b32.xlu0 %v317, 113
        %v448 = vpop.permute.xlu0 %447
        %vm449 = vcmask 924672
        %v450 = vsel %vm449, %v446, %v448
        %v454 = vmul.f32 %v439, %v446
        %v455 = vmul.f32 %v440, %v450
        %v456 = vmul.f32 %v441, %v448
        %v457 = vmul.f32 %v442, %v446
        %v458 = vmul.f32 %v443, %v450
        %v459 = vmul.f32 %v444, %v448
        %466 = vrot.lane.b32.xlu0 %v454, 15
        %v467 = vpop.permute.xlu0 %466
        %468 = vrot.lane.b32.xlu0 %v455, 15
        %v469 = vpop.permute.xlu0 %468
        %470 = vrot.lane.b32.xlu0 %v456, 15
        %v471 = vpop.permute.xlu0 %470
        %472 = vrot.lane.b32.xlu0 %v457, 15
        %v473 = vpop.permute.xlu0 %472
        %474 = vrot.lane.b32.xlu0 %v458, 15
        %v475 = vpop.permute.xlu0 %474
        %476 = vrot.lane.b32.xlu0 %v459, 15
        %v477 = vpop.permute.xlu0 %476
        %vm478 = vcmask 121856
        %v479 = vsel %vm478, %v467, %v469
        %v480 = vsel %vm478, %v469, %v471
        %v481 = vsel %vm478, %v473, %v475
        %v482 = vsel %vm478, %v475, %v477
        %487 = vst [vmem:[#allocation3 + $0x40] sm:$0xff] %v479
        %488 = vst [vmem:[#allocation3 + $0x48] sm:$0xff] %v480
        %489 = vst [vmem:[#allocation3 + $0x50] sm:$0xff] %v481
        %490 = vst [vmem:[#allocation3 + $0x58] sm:$0xff] %v482
        %v491 = vld [vmem:[#allocation2] sm:$0xff]
        %v492 = vld [vmem:[#allocation2 + $0x8] sm:$0xff]
        %v493 = vld [vmem:[#allocation2 + $0x10] sm:$0xff]
        %v494 = vld [vmem:[#allocation2 + $0x20] sm:$0xff]
        %v495 = vld [vmem:[#allocation2 + $0x28] sm:$0xff]
        %v496 = vld [vmem:[#allocation2 + $0x30] sm:$0xff]
        %497 = vrot.lane.b32.xlu0 %v302, 127
        %v498 = vpop.permute.xlu0 %497
        %499 = vrot.lane.b32.xlu0 %v306, 127
        %v500 = vpop.permute.xlu0 %499
        %vm501 = vcmask 1039360
        %v502 = vsel %vm501, %v498, %v500
        %v506 = vmul.f32 %v491, %v498
        %v507 = vmul.f32 %v492, %v502
        %v508 = vmul.f32 %v493, %v500
        %v509 = vmul.f32 %v494, %v498
        %v510 = vmul.f32 %v495, %v502
        %v511 = vmul.f32 %v496, %v500
        %518 = vrot.lane.b32.xlu0 %v506, 1
        %v519 = vpop.permute.xlu0 %518
        %520 = vrot.lane.b32.xlu0 %v507, 1
        %v521 = vpop.permute.xlu0 %520
        %522 = vrot.lane.b32.xlu0 %v508, 1
        %v523 = vpop.permute.xlu0 %522
        %524 = vrot.lane.b32.xlu0 %v509, 1
        %v525 = vpop.permute.xlu0 %524
        %526 = vrot.lane.b32.xlu0 %v510, 1
        %v527 = vpop.permute.xlu0 %526
        %528 = vrot.lane.b32.xlu0 %v511, 1
        %v529 = vpop.permute.xlu0 %528
        %vm530 = vcmask 7168
        %v531 = vsel %vm530, %v519, %v521
        %v532 = vsel %vm530, %v521, %v523
        %v533 = vsel %vm530, %v525, %v527
        %v534 = vsel %vm530, %v527, %v529
        %539 = vst [vmem:[#allocation3 + $0x60] sm:$0xff] %v531
        %540 = vst [vmem:[#allocation3 + $0x68] sm:$0xff] %v532
        %541 = vst [vmem:[#allocation3 + $0x70] sm:$0xff] %v533
        %542 = vst [vmem:[#allocation3 + $0x78] sm:$0xff] %v534
        %v543 = vld [vmem:[#allocation2 + $0x8] sm:$0xff]
        %v544 = vld [vmem:[#allocation2 + $0x10] sm:$0xff]
        %v545 = vld [vmem:[#allocation2 + $0x28] sm:$0xff]
        %v546 = vld [vmem:[#allocation2 + $0x30] sm:$0xff]
        %547 = vst [vmem:[#allocation3 + $0x80] sm:$0xff] %v543
        %548 = vst [vmem:[#allocation3 + $0x88] sm:$0xff] %v544
        %549 = vst [vmem:[#allocation3 + $0x90] sm:$0xff] %v545
        %550 = vst [vmem:[#allocation3 + $0x98] sm:$0xff] %v546
        %v551 = vld [vmem:[#allocation2 + $0x8] sm:$0xff]
        %v552 = vld [vmem:[#allocation2 + $0x10] sm:$0xff]
        %v553 = vld [vmem:[#allocation2 + $0x18] sm:$0xff]
        %v554 = vld [vmem:[#allocation2 + $0x28] sm:$0xff]
        %v555 = vld [vmem:[#allocation2 + $0x30] sm:$0xff]
        %v556 = vld [vmem:[#allocation2 + $0x38] sm:$0xff]
        %557 = vrot.lane.b32.xlu0 %v313, 1
        %v558 = vpop.permute.xlu0 %557
        %559 = vrot.lane.b32.xlu0 %v317, 1
        %v560 = vpop.permute.xlu0 %559
        %v561 = vsel %vm530, %v558, %v560
        %v565 = vmul.f32 %v551, %v558
        %v566 = vmul.f32 %v552, %v561
        %v567 = vmul.f32 %v553, %v560
        %v568 = vmul.f32 %v554, %v558
        %v569 = vmul.f32 %v555, %v561
        %v570 = vmul.f32 %v556, %v560
        %577 = vrot.lane.b32.xlu0 %v565, 127
        %v578 = vpop.permute.xlu0 %577
        %579 = vrot.lane.b32.xlu0 %v566, 127
        %v580 = vpop.permute.xlu0 %579
        %581 = vrot.lane.b32.xlu0 %v567, 127
        %v582 = vpop.permute.xlu0 %581
        %583 = vrot.lane.b32.xlu0 %v568, 127
        %v584 = vpop.permute.xlu0 %583
        %585 = vrot.lane.b32.xlu0 %v569, 127
        %v586 = vpop.permute.xlu0 %585
        %587 = vrot.lane.b32.xlu0 %v570, 127
        %v588 = vpop.permute.xlu0 %587
        %v589 = vsel %vm501, %v578, %v580
        %v590 = vsel %vm501, %v580, %v582
        %v591 = vsel %vm501, %v584, %v586
        %v592 = vsel %vm501, %v586, %v588
        %597 = vst [vmem:[#allocation3 + $0xa0] sm:$0xff] %v589
        %598 = vst [vmem:[#allocation3 + $0xa8] sm:$0xff] %v590
        %599 = vst [vmem:[#allocation3 + $0xb0] sm:$0xff] %v591
        %600 = vst [vmem:[#allocation3 + $0xb8] sm:$0xff] %v592
        %v601 = vld [vmem:[#allocation2 + $0x8] sm:$0xff]
        %v602 = vld [vmem:[#allocation2 + $0x10] sm:$0xff]
        %v603 = vld [vmem:[#allocation2 + $0x18] sm:$0xff]
        %v604 = vld [vmem:[#allocation2 + $0x28] sm:$0xff]
        %v605 = vld [vmem:[#allocation2 + $0x30] sm:$0xff]
        %v606 = vld [vmem:[#allocation2 + $0x38] sm:$0xff]
        %607 = vrot.lane.b32.xlu0 %v302, 15
        %v608 = vpop.permute.xlu0 %607
        %609 = vrot.lane.b32.xlu0 %v306, 15
        %v610 = vpop.permute.xlu0 %609
        %v611 = vsel %vm478, %v608, %v610
        %v615 = vmul.f32 %v601, %v608
        %v616 = vmul.f32 %v602, %v611
        %v617 = vmul.f32 %v603, %v610
        %v618 = vmul.f32 %v604, %v608
        %v619 = vmul.f32 %v605, %v611
        %v620 = vmul.f32 %v606, %v610
        %627 = vrot.lane.b32.xlu0 %v615, 113
        %v628 = vpop.permute.xlu0 %627
        %629 = vrot.lane.b32.xlu0 %v616, 113
        %v630 = vpop.permute.xlu0 %629
        %631 = vrot.lane.b32.xlu0 %v617, 113
        %v632 = vpop.permute.xlu0 %631
        %633 = vrot.lane.b32.xlu0 %v618, 113
        %v634 = vpop.permute.xlu0 %633
        %635 = vrot.lane.b32.xlu0 %v619, 113
        %v636 = vpop.permute.xlu0 %635
        %637 = vrot.lane.b32.xlu0 %v620, 113
        %v638 = vpop.permute.xlu0 %637
        %v639 = vsel %vm449, %v628, %v630
        %v640 = vsel %vm449, %v630, %v632
        %v641 = vsel %vm449, %v634, %v636
        %v642 = vsel %vm449, %v636, %v638
        %647 = vst [vmem:[#allocation3 + $0xc0] sm:$0xff] %v639
        %648 = vst [vmem:[#allocation3 + $0xc8] sm:$0xff] %v640
        %649 = vst [vmem:[#allocation3 + $0xd0] sm:$0xff] %v641
        %650 = vst [vmem:[#allocation3 + $0xd8] sm:$0xff] %v642
        %v651 = vld [vmem:[#allocation2 + $0x8] sm:$0xff]
        %v652 = vld [vmem:[#allocation2 + $0x10] sm:$0xff]
        %v653 = vld [vmem:[#allocation2 + $0x18] sm:$0xff]
        %v654 = vld [vmem:[#allocation2 + $0x28] sm:$0xff]
        %v655 = vld [vmem:[#allocation2 + $0x30] sm:$0xff]
        %v656 = vld [vmem:[#allocation2 + $0x38] sm:$0xff]
        %663 = vrot.lane.b32.xlu0 %v651, 112
        %v664 = vpop.permute.xlu0 %663
        %665 = vrot.lane.b32.xlu0 %v652, 112
        %v666 = vpop.permute.xlu0 %665
        %667 = vrot.lane.b32.xlu0 %v653, 112
        %v668 = vpop.permute.xlu0 %667
        %669 = vrot.lane.b32.xlu0 %v654, 112
        %v670 = vpop.permute.xlu0 %669
        %671 = vrot.lane.b32.xlu0 %v655, 112
        %v672 = vpop.permute.xlu0 %671
        %673 = vrot.lane.b32.xlu0 %v656, 112
        %v674 = vpop.permute.xlu0 %673
        %vm675 = vcmask 916480
        %v676 = vsel %vm675, %v664, %v666
        %v677 = vsel %vm675, %v666, %v668
        %v678 = vsel %vm675, %v670, %v672
        %v679 = vsel %vm675, %v672, %v674
        %684 = vst [vmem:[#allocation3 + $0xe0] sm:$0xff] %v676
        %685 = vst [vmem:[#allocation3 + $0xe8] sm:$0xff] %v677
        %686 = vst [vmem:[#allocation3 + $0xf0] sm:$0xff] %v678
        %687 = vst [vmem:[#allocation3 + $0xf8] sm:$0xff] %v679
        %v688 = vld [vmem:[#allocation2 + $0x8] sm:$0xff]
        %v689 = vld [vmem:[#allocation2 + $0x10] sm:$0xff]
        %v690 = vld [vmem:[#allocation2 + $0x18] sm:$0xff]
        %v691 = vld [vmem:[#allocation2 + $0x28] sm:$0xff]
        %v692 = vld [vmem:[#allocation2 + $0x30] sm:$0xff]
        %v693 = vld [vmem:[#allocation2 + $0x38] sm:$0xff]
        %694 = vrot.lane.b32.xlu0 %v313, 17
        %v695 = vpop.permute.xlu0 %694
        %696 = vrot.lane.b32.xlu0 %v317, 17
        %v697 = vpop.permute.xlu0 %696
        %v698 = vsel %vm389, %v695, %v697
        %v702 = vmul.f32 %v688, %v695
        %v703 = vmul.f32 %v689, %v698
        %v704 = vmul.f32 %v690, %v697
        %v705 = vmul.f32 %v691, %v695
        %v706 = vmul.f32 %v692, %v698
        %v707 = vmul.f32 %v693, %v697
        %714 = vrot.lane.b32.xlu0 %v702, 111
        %v715 = vpop.permute.xlu0 %714
        %716 = vrot.lane.b32.xlu0 %v703, 111
        %v717 = vpop.permute.xlu0 %716
        %718 = vrot.lane.b32.xlu0 %v704, 111
        %v719 = vpop.permute.xlu0 %718
        %720 = vrot.lane.b32.xlu0 %v705, 111
        %v721 = vpop.permute.xlu0 %720
        %722 = vrot.lane.b32.xlu0 %v706, 111
        %v723 = vpop.permute.xlu0 %722
        %724 = vrot.lane.b32.xlu0 %v707, 111
        %v725 = vpop.permute.xlu0 %724
        %v726 = vsel %vm360, %v715, %v717
        %v727 = vsel %vm360, %v717, %v719
        %v728 = vsel %vm360, %v721, %v723
        %v729 = vsel %vm360, %v723, %v725
        %734 = vst [vmem:[#allocation3 + $0x100] sm:$0xff] %v726
        %735 = vst [vmem:[#allocation3 + $0x108] sm:$0xff] %v727
        %736 = vst [vmem:[#allocation3 + $0x110] sm:$0xff] %v728
        %737 = vst [vmem:[#allocation3 + $0x118] sm:$0xff] %v729
        %v738 = vld [vmem:[#allocation3] sm:$0xff]
        %v739 = vld [vmem:[#allocation3 + $0x8] sm:$0xff]
        %v740 = vld [vmem:[#allocation3 + $0x10] sm:$0xff]
        %v741 = vld [vmem:[#allocation3 + $0x18] sm:$0xff]
        %v742 = vld [vmem:[#allocation3 + $0x20] sm:$0xff]
        %v743 = vld [vmem:[#allocation3 + $0x28] sm:$0xff]
        %v744 = vld [vmem:[#allocation3 + $0x30] sm:$0xff]
        %v745 = vld [vmem:[#allocation3 + $0x38] sm:$0xff]
        %v746 = vld [vmem:[#allocation3 + $0x40] sm:$0xff]
        %v747 = vld [vmem:[#allocation3 + $0x48] sm:$0xff]
        %v748 = vld [vmem:[#allocation3 + $0x50] sm:$0xff]
        %v749 = vld [vmem:[#allocation3 + $0x58] sm:$0xff]
        %v750 = vld [vmem:[#allocation3 + $0x60] sm:$0xff]
        %v751 = vld [vmem:[#allocation3 + $0x68] sm:$0xff]
        %v752 = vld [vmem:[#allocation3 + $0x70] sm:$0xff]
        %v753 = vld [vmem:[#allocation3 + $0x78] sm:$0xff]
        %v754 = vld [vmem:[#allocation3 + $0x80] sm:$0xff]
        %v755 = vld [vmem:[#allocation3 + $0x88] sm:$0xff]
        %v756 = vld [vmem:[#allocation3 + $0x90] sm:$0xff]
        %v757 = vld [vmem:[#allocation3 + $0x98] sm:$0xff]
        %v758 = vld [vmem:[#allocation3 + $0xa0] sm:$0xff]
        %v759 = vld [vmem:[#allocation3 + $0xa8] sm:$0xff]
        %v760 = vld [vmem:[#allocation3 + $0xb0] sm:$0xff]
        %v761 = vld [vmem:[#allocation3 + $0xb8] sm:$0xff]
        %v762 = vld [vmem:[#allocation3 + $0xc0] sm:$0xff]
        %v763 = vld [vmem:[#allocation3 + $0xc8] sm:$0xff]
        %v764 = vld [vmem:[#allocation3 + $0xd0] sm:$0xff]
        %v765 = vld [vmem:[#allocation3 + $0xd8] sm:$0xff]
        %v766 = vld [vmem:[#allocation3 + $0xe0] sm:$0xff]
        %v767 = vld [vmem:[#allocation3 + $0xe8] sm:$0xff]
        %v768 = vld [vmem:[#allocation3 + $0xf0] sm:$0xff]
        %v769 = vld [vmem:[#allocation3 + $0xf8] sm:$0xff]
        %v770 = vld [vmem:[#allocation3 + $0x100] sm:$0xff]
        %v771 = vld [vmem:[#allocation3 + $0x108] sm:$0xff]
        %v772 = vld [vmem:[#allocation3 + $0x110] sm:$0xff]
        %v773 = vld [vmem:[#allocation3 + $0x118] sm:$0xff]
        %v775 = vsel %vm426, %v337, 0
        %v778 = vsel %vm426, %v339, 0
        %v781 = vsel %vm426, %v341, 0
        %783 = vmatprep.subr.mxu0 %v739
        %784 = vmatpush1.msra.mxu0 %v738
        %785 = vmatprep.subr.mxu0 %v741
        %786 = vmatpush1.msra.mxu0 %v740
        %787 = vmatprep.subr.mxu0 %v743
        %788 = vmatpush1.msra.mxu0 %v742
        %789 = vmatprep.subr.mxu0 %v745
        %790 = vmatpush1.msra.mxu0 %v744
        %791 = vmatprep.subr.mxu0 %v747
        %792 = vmatpush1.msra.mxu0 %v746
        %793 = vmatprep.subr.mxu0 %v749
        %794 = vmatpush1.msra.mxu0 %v748
        %795 = vmatprep.subr.mxu0 %v751
        %796 = vmatpush1.msra.mxu0 %v750
        %797 = vmatprep.subr.mxu0 %v753
        %798 = vmatpush1.msra.mxu0 %v752
        %799 = vmatprep.subr.mxu0 %v755
        %800 = vmatpush1.msra.mxu0 %v754
        %801 = vmatprep.subr.mxu0 %v757
        %802 = vmatpush1.msra.mxu0 %v756
        %803 = vmatprep.subr.mxu0 %v759
        %804 = vmatpush1.msra.mxu0 %v758
        %805 = vmatprep.subr.mxu0 %v761
        %806 = vmatpush1.msra.mxu0 %v760
        %807 = vmatprep.subr.mxu0 %v763
        %808 = vmatpush1.msra.mxu0 %v762
        %809 = vmatprep.subr.mxu0 %v765
        %810 = vmatpush1.msra.mxu0 %v764
        %811 = vmatprep.subr.mxu0 %v767
        %812 = vmatpush1.msra.mxu0 %v766
        %813 = vmatprep.subr.mxu0 %v769
        %814 = vmatpush1.msra.mxu0 %v768
        %815 = vmatprep.subr.mxu0 %v771
        %816 = vmatpush1.msra.mxu0 %v770
        %817 = vmatprep.subr.mxu0 %v773
        %818 = vmatpush1.msra.mxu0 %v772
        %819 = vmatprep.subr.mxu0 0.0
        %820 = vmatpush1.msra.mxu0 0.0
        %821 = vmatprep.subr.mxu0 0.0
        %822 = vmatpush1.msra.mxu0 0.0
        %823 = vmatprep.subr.mxu0 0.0
        %824 = vmatpush1.msra.mxu0 0.0
        %825 = vmatprep.subr.mxu0 0.0
        %826 = vmatpush1.msra.mxu0 0.0
        %827 = vmatprep.subr.mxu0 0.0
        %828 = vmatpush1.msra.mxu0 0.0
        %829 = vmatprep.subr.mxu0 0.0
        %830 = vmatpush1.msra.mxu0 0.0
        %831 = vmatprep.subr.mxu0 0.0
        %832 = vmatpush1.msra.mxu0 0.0
        %833 = vmatprep.subr.mxu0 0.0
        %834 = vmatpush1.msra.mxu0 0.0
        %835 = vmatprep.subr.mxu0 0.0
        %836 = vmatpush1.msra.mxu0 0.0
        %837 = vmatprep.subr.mxu0 0.0
        %838 = vmatpush1.msra.mxu0 0.0
        %839 = vmatprep.subr.mxu0 0.0
        %840 = vmatpush1.msra.mxu0 0.0
        %841 = vmatprep.subr.mxu0 0.0
        %842 = vmatpush1.msra.mxu0 0.0
        %843 = vmatprep.subr.mxu0 0.0
        %844 = vmatpush1.msra.mxu0 0.0
        %845 = vmatprep.subr.mxu0 0.0
        %846 = vmatpush1.msra.mxu0 0.0
        %847 = vmatprep.mubr.f32.mxu0 %v775
        %848 = vmatmul.mubr.f32.gmra.mrb[0].mxu0 %v336
        %v849 = vpop.f32.mrb[0].mxu0
        %v850 = vadd.f32 %v324, %v849
        %v851 = vpop.f32.mrb[0].mxu0
        %v852 = vadd.f32 %v324, %v851
        %853 = vmatprep.mubr.f32.mxu0 %v778
        %854 = vmatmul.mubr.f32.gmra.mrb[0].mxu0 %v338
        %v855 = vpop.f32.mrb[0].mxu0
        %v856 = vadd.f32 %v329, %v855
        %v857 = vpop.f32.mrb[0].mxu0
        %v858 = vadd.f32 %v329, %v857
        %859 = vmatprep.mubr.f32.mxu0 %v781
        %860 = vmatmul.mubr.f32.gmra.mrb[0].mxu0 %v340
        %v861 = vpop.f32.mrb[0].mxu0
        %v862 = vadd.f32 %v334, %v861
        %v863 = vpop.f32.mrb[0].mxu0
        %v864 = vadd.f32 %v334, %v863
        %865 = vdwg.mxu0
        %v866 = vxor.u32 %v850, 2147483648
        %v867 = vxor.u32 %v852, 2147483648
        %v868 = vmul.f32 %v866, 1.442695
        %v869 = vpow.pop %v868
        %v870 = vmul.f32 %v867, 1.442695
        %v871 = vpow.pop %v870
        %v872 = vadd.f32 %v869, 1.0
        %v873 = vadd.f32 %v871, 1.0
        %v874 = vrcp.pop %v872
        %v875 = vmul.f32 1.0, %v874
        %v876 = vrcp.pop %v873
        %v877 = vmul.f32 1.0, %v876
        %v878 = vxor.u32 %v856, 2147483648
        %v879 = vxor.u32 %v858, 2147483648
        %v880 = vmul.f32 %v878, 1.442695
        %v881 = vpow.pop %v880
        %v882 = vmul.f32 %v879, 1.442695
        %v883 = vpow.pop %v882
        %v884 = vadd.f32 %v881, 1.0
        %v885 = vadd.f32 %v883, 1.0
        %v886 = vrcp.pop %v884
        %v887 = vmul.f32 1.0, %v886
        %v888 = vrcp.pop %v885
        %v889 = vmul.f32 1.0, %v888
        %v890 = vtanh.pop %v862
        %v891 = vtanh.pop %v864
        %v892 = vmul.f32 %v875, %v342
        %v893 = vmul.f32 %v877, %v343
        %v894 = vsub.f32 1.0, %v887
        %v895 = vsub.f32 1.0, %v889
        %v896 = vmul.f32 %v892, %v894
        %v897 = vmul.f32 %v893, %v895
        %v898 = vmul.f32 %v887, %v890
        %v899 = vmul.f32 %v889, %v891
        %v900 = vadd.f32 %v896, %v898
        %v901 = vadd.f32 %v897, %v899
        %902 = vst [vmem:[%s292] sm:$0xff] %v900
        %903 = vst [vmem:[%s292 + $0x8] sm:$0xff] %v901
        %s904 = sand.u32 %s148, 1
        %s905 = scalar_lea.sflag [#allocation6], %s904
        %s906 = sand.u32 %s148, 1
        %s907 = smul.addr %s906, 16
        %s908 = scalar_lea.vmem [#allocation10], %s907
        // Predicated region
        $region53: #{tpu_custom_call.1} parent=39 // pred_check
          %p909 = pneg %p158
        $region54: #{tpu_custom_call.1} parent=39 // pred_check_branch
          %911 = sbr.rel (%p909) target = $region56
        $region55: #{tpu_custom_call.1} parent=39 // pred_region
          %s913 = ssub.s32 256, 256
          %914 = vsyncadd %s905, %s913
          %s915 = smul.addr %s25, 2
          %s916 = smul.addr %s915, 128
          %s917 = scalar_lea.hbm %s5, %s916
          %s919 = sshll.u32 %s908, 4
          %s920 = int_to_ptr.vmem [resolvable:$true] %s919
          %922 = dma.vmem_to_hbm [thread:$0]  %s920, 256, %s917, %s905
        $region56: #{tpu_custom_call.1} parent=39 // pred_fallthru
          _
      $region40: #{tpu_custom_call.1} parent=5 // pred_fallthru
        _
      %p923 = scmp.le.s32.totalorder 2, %s20
      // Predicated region
      $region57: #{tpu_custom_call.1} parent=5 // pred_check
        %p924 = pneg %p923
      $region58: #{tpu_custom_call.1} parent=5 // pred_check_branch
        %926 = sbr.rel (%p924) target = $region60
      $region59: #{tpu_custom_call.1} parent=5 // pred_region
        %s927 = ssub.s32 %s20, 2
        // Predicated region
        $region61: #{tpu_custom_call.1} parent=59 // pred_check
          %p928 = pneg %p164
        $region62: #{tpu_custom_call.1} parent=59 // pred_check_branch
          %930 = sbr.rel (%p928) target = $region64
        $region63: #{tpu_custom_call.1} parent=59 // pred_region
          %s931 = sand.u32 %s149, 1
          %s932 = scalar_lea.sflag [#allocation6], %s931
          %s933 = sand.u32 %s149, 1
          %s934 = smul.addr %s933, 16
          %s935 = scalar_lea.vmem [#allocation10], %s934
          %936 = dma.done %s932, 256
        $region64: #{tpu_custom_call.1} parent=59 // pred_fallthru
          _
      $region60: #{tpu_custom_call.1} parent=5 // pred_fallthru
        _
    $region6: #{tpu_custom_call.1} parent=1 // loop_footer
      %s24 = sadd.s32 1, %s20
    $region7: #{tpu_custom_call.1} parent=1 // loop_footer_branch
      %19 = sbr.rel target = $region3
    $region8: #{tpu_custom_call.1} parent=1 // loop_exit
      _
    %937 = vsyncpa [#allocation5], 1
    %s938 = scalar_lea.sflag [#allocation5], 1
    %939 = vsyncpa %s938, 1
    %940 = vsyncpa [#allocation8], 1
    %s941 = scalar_lea.sflag [#allocation8], 1
    %942 = vsyncpa %s941, 1
    %943 = vsyncpa [#allocation6], 1
    %s944 = scalar_lea.sflag [#allocation6], 1
    %945 = vsyncpa %s944, 1

</llo_original>
